<compile_context>
chip_gen: v5e
topology: v5e:2x2
jax: 0.10.0
libtpu: 0.0.40
codegen_flags: <defaults>
</compile_context>

<pallas_src>
import functools

import jax
import jax.numpy as jnp
from jax import lax
from jax.experimental import pallas as pl
from jax.experimental.pallas import tpu as pltpu

_EPS = 1e-6


def _cdiv(a: int, b: int) -> int:
    return -(-a // b)


def _sublane_multiple(dtype) -> int:
    # f32 -> 8, bf16 -> 16, int8/fp8 -> 32 sublanes minimum tile.
    return {4: 8, 2: 16, 1: 32}.get(jnp.dtype(dtype).itemsize, 8)


def _vmem_capacity_bytes() -> int:
    try:
        return int(pltpu.get_tpu_info().vmem_capacity_bytes)
    except Exception:
        return 64 * 1024 * 1024  # conservative (v7x-sized) fallback


# ---------------------------------------------------------------------------
# Single-block fused kernel (whole [N, D] resident in VMEM): 1 read + 1 write.
# ---------------------------------------------------------------------------
def _pairnorm_single_block_kernel(x_ref, o_ref, *, mode: str, scale: float):
    x = x_ref[...].astype(jnp.float32)
    inv_n = 1.0 / float(x.shape[0])

    col_mean = jnp.sum(x, axis=0, keepdims=True) * inv_n              # [1, D]

    if mode == "PN":
        xc = x - col_mean
        row_sq = jnp.sum(xc * xc, axis=1, keepdims=True)              # [N, 1]
        mean_sq = jnp.sum(row_sq, axis=0, keepdims=True) * inv_n      # [1, 1]
        out = xc * (scale * lax.rsqrt(_EPS + mean_sq))                # EUP
    elif mode == "PN-SI":
        xc = x - col_mean
        row_sq = jnp.sum(xc * xc, axis=1, keepdims=True)              # [N, 1]
        out = xc * (scale * lax.rsqrt(_EPS + row_sq))
    else:  # "PN-SCS"
        row_sq = jnp.sum(x * x, axis=1, keepdims=True)                # [N, 1]
        out = x * (scale * lax.rsqrt(_EPS + row_sq)) - col_mean

    o_ref[...] = out.astype(o_ref.dtype)


def _pairnorm_single_block(x, mode, scale, vmem_cap):
    n, d = x.shape
    kernel = functools.partial(
        _pairnorm_single_block_kernel, mode=mode, scale=float(scale))
    return pl.pallas_call(
        kernel,
        out_shape=jax.ShapeDtypeStruct((n, d), x.dtype),
        grid=(1,),
        in_specs=[pl.BlockSpec((n, d), lambda i: (0, 0))],
        out_specs=pl.BlockSpec((n, d), lambda i: (0, 0)),
        compiler_params=pltpu.CompilerParams(
            dimension_semantics=("arbitrary",),
            vmem_limit_bytes=int(vmem_cap * 3 // 4)),
    )(x)


# ---------------------------------------------------------------------------
# Tiled two-pass path for large N (streaming, row-tiled, ragged last tile).
# ---------------------------------------------------------------------------
def _pairnorm_stats_kernel(x_ref, *out_refs, n, tn, tiles_per_core, need_sumsq):
    """Accumulate column sums (and optionally total sum-of-squares)."""
    colsum_ref = out_refs[0]
    c = pl.program_id(0)          # core-split axis ("parallel")
    i = pl.program_id(1)          # reduction axis ("arbitrary")

    @pl.when(i == 0)
    def _():
        colsum_ref[...] = jnp.zeros_like(colsum_ref)
        if need_sumsq:
            out_refs[1][...] = jnp.zeros_like(out_refs[1])

    # Mask rows beyond the true N (ragged last tile / phantom tiles read
    # garbage, not zero).
    t = c * tiles_per_core + i
    row_ids = lax.broadcasted_iota(jnp.int32, (tn, 1), 0)
    valid = (t * tn + row_ids) < n
    x = jnp.where(valid, x_ref[...].astype(jnp.float32), 0.0)

    colsum = jnp.sum(x, axis=0, keepdims=True)                        # [1, D]
    colsum_ref[...] += colsum.reshape(colsum_ref.shape)
    if need_sumsq:
        row_sq = jnp.sum(x * x, axis=1, keepdims=True)                # [tn, 1]
        ssq = jnp.sum(row_sq, axis=0, keepdims=True)                  # [1, 1]
        out_refs[1][...] += ssq.reshape(out_refs[1].shape)


def _pairnorm_apply_pn_kernel(x_ref, mu_ref, alpha_ref, o_ref):
    x = x_ref[...].astype(jnp.float32)
    # alpha = scale * rsqrt(1e-6 + mean_i ||x_i - mu||^2), precomputed [1, 1]
    o_ref[...] = ((x - mu_ref[...]) * alpha_ref[...]).astype(o_ref.dtype)


def _pairnorm_apply_rownorm_kernel(x_ref, mu_ref, o_ref, *, mode, scale):
    x = x_ref[...].astype(jnp.float32)
    mu = mu_ref[...]
    if mode == "PN-SI":
        xc = x - mu
        inv = lax.rsqrt(_EPS + jnp.sum(xc * xc, axis=1, keepdims=True))
        out = xc * (scale * inv)
    else:  # "PN-SCS"
        inv = lax.rsqrt(_EPS + jnp.sum(x * x, axis=1, keepdims=True))
        out = x * (scale * inv) - mu
    o_ref[...] = out.astype(o_ref.dtype)


def _pairnorm_tiled(x, mode, scale, vmem_cap, row_tile=None):
    n, d = x.shape
    sub = _sublane_multiple(x.dtype)
    itemsize = jnp.dtype(x.dtype).itemsize

    # Row tile driven by a ~2 MiB per-tile byte target (amortizes per-step
    # overhead at the HBM roofline), dtype-aware sublane alignment, never
    # larger than N rounded down to the sublane multiple.
    if row_tile is None:
        row_tile = max(sub, (2 * 1024 * 1024) // max(1, d * itemsize))
    tn = max(sub, (int(row_tile) // sub) * sub)
    tn = min(tn, max(sub, (n // sub) * sub))

    num_tiles = _cdiv(n, tn)
    tiles_per_core = _cdiv(num_tiles, 2)          # 2-way split for v7x megacore
    need_sumsq = (mode == "PN")
    tiled_vmem = int(min(vmem_cap // 2, 64 * 1024 * 1024))

    # ---- Pass 1: global statistics (per-core partial accumulators). ----
    def x_stats_map(c, i):
        # Clamp phantom tiles (when num_tiles is odd) to a valid block; their
        # rows are fully masked inside the kernel.
        return (jnp.minimum(c * tiles_per_core + i, num_tiles - 1), 0)

    stats_kernel = functools.partial(
        _pairnorm_stats_kernel, n=n, tn=tn,
        tiles_per_core=tiles_per_core, need_sumsq=need_sumsq)

    out_shapes = [jax.ShapeDtypeStruct((2, 1, d), jnp.float32)]
    out_specs = [pl.BlockSpec((1, 1, d), lambda c, i: (c, 0, 0))]
    if need_sumsq:
        out_shapes.append(jax.ShapeDtypeStruct((2, 1, 1), jnp.float32))
        out_specs.append(pl.BlockSpec((1, 1, 1), lambda c, i: (c, 0, 0)))

    stats = pl.pallas_call(
        stats_kernel,
        out_shape=tuple(out_shapes),
        grid=(2, tiles_per_core),
        in_specs=[pl.BlockSpec((tn, d), x_stats_map)],
        out_specs=tuple(out_specs),
        compiler_params=pltpu.CompilerParams(
            dimension_semantics=("parallel", "arbitrary"),
            vmem_limit_bytes=tiled_vmem),
    )(x)

    colsum_part = stats[0]                                            # (2,1,D)
    inv_n = 1.0 / float(n)
    mu = (jnp.sum(colsum_part, axis=0) * inv_n).astype(jnp.float32)   # (1, D)

    apply_params = pltpu.CompilerParams(
        dimension_semantics=("parallel",), vmem_limit_bytes=tiled_vmem)

    # ---- Pass 2: apply (row-independent -> parallel across TensorCores). ----
    if mode == "PN":
        sumsq = jnp.sum(stats[1])                                     # scalar
        # sum_i ||x_i - mu||^2 = sum_i ||x_i||^2 - n * ||mu||^2  (one pass;
        # can lose precision for extreme column means - see module docstring).
        centered = sumsq - float(n) * jnp.sum(mu * mu)
        alpha = (float(scale) * lax.rsqrt(_EPS + centered * inv_n))
        alpha = alpha.astype(jnp.float32).reshape(1, 1)
        out = pl.pallas_call(
            _pairnorm_apply_pn_kernel,
            out_shape=jax.ShapeDtypeStruct((n, d), x.dtype),
            grid=(num_tiles,),
            in_specs=[pl.BlockSpec((tn, d), lambda i: (i, 0)),
                      pl.BlockSpec((1, d), lambda i: (0, 0)),
                      pl.BlockSpec((1, 1), lambda i: (0, 0))],
            out_specs=pl.BlockSpec((tn, d), lambda i: (i, 0)),
            compiler_params=apply_params,
        )(x, mu, alpha)
    else:
        kernel = functools.partial(
            _pairnorm_apply_rownorm_kernel, mode=mode, scale=float(scale))
        out = pl.pallas_call(
            kernel,
            out_shape=jax.ShapeDtypeStruct((n, d), x.dtype),
            grid=(num_tiles,),
            in_specs=[pl.BlockSpec((tn, d), lambda i: (i, 0)),
                      pl.BlockSpec((1, d), lambda i: (0, 0))],
            out_specs=pl.BlockSpec((tn, d), lambda i: (i, 0)),
            compiler_params=apply_params,
        )(x, mu)
    return out


# ---------------------------------------------------------------------------
# Public wrapper.
# ---------------------------------------------------------------------------
def pairnorm(x, mode="PN", scale=10.0, *, single_block_bytes=None,
             row_tile=None):
    """PairNorm forward. x: [N, D] (nodes x features)."""
    assert mode in ["None", "PN", "PN-SI", "PN-SCS"]
    if mode == "None":
        return x  # identity: skip the HBM->VMEM->HBM round trip entirely.

    n, d = x.shape
    vmem_cap = _vmem_capacity_bytes()
    if single_block_bytes is None:
        # ~1/10 of physical VMEM of raw input: with default double-buffered
        # in+out tiles and f32 temporaries this stays within the explicit
        # vmem_limit (3/4 of capacity) on v5e/v6e (128 MiB) and v7x (64 MiB).
        single_block_bytes = vmem_cap // 10

    in_bytes = n * d * jnp.dtype(x.dtype).itemsize
    sub = _sublane_multiple(x.dtype)
    if in_bytes <= single_block_bytes or n < 4 * sub:
        return _pairnorm_single_block(x, mode, scale, vmem_cap)
    return _pairnorm_tiled(x, mode, scale, vmem_cap, row_tile=row_tile)


# ---------------------------------------------------------------------------
# Pure-JAX reference (matches the PyTorch module).
# ---------------------------------------------------------------------------
def _pairnorm_ref(x, mode="PN", scale=10.0):
    if mode == "None":
        return x
    col_mean = x.mean(axis=0)
    if mode == "PN":
        xc = x - col_mean
        rownorm_mean = jnp.sqrt(1e-6 + (xc ** 2).sum(axis=1).mean())
        return scale * xc / rownorm_mean
    if mode == "PN-SI":
        xc = x - col_mean
        rownorm_ind = jnp.sqrt(1e-6 + (xc ** 2).sum(axis=1, keepdims=True))
        return scale * xc / rownorm_ind
    rownorm_ind = jnp.sqrt(1e-6 + (x ** 2).sum(axis=1, keepdims=True))
    return scale * x / rownorm_ind - col_mean


if __name__ == "__main__":
    # Small graph (single fused VMEM block path), GADNR-like hidden sizes.
    N, D = 64, 32
    x = jax.random.normal(jax.random.PRNGKey(0), (N, D), dtype=jnp.float32)
    for mode in ["PN", "PN-SI", "PN-SCS", "None"]:
        out = pairnorm(x, mode=mode, scale=10.0)
        jax.block_until_ready(out)
        ref = _pairnorm_ref(x, mode=mode, scale=10.0)
        if out.shape != x.shape or not jnp.allclose(out, ref, atol=1e-4, rtol=1e-4):
            raise AssertionError(f"single-block mismatch for mode={mode}")

    # Force the row-tiled two-pass path with ragged (non-tile-aligned) N and
    # non-128-aligned D, exercising masking + the 2-way stats split.
    N2, D2 = 300, 200
    x2 = jax.random.normal(jax.random.PRNGKey(1), (N2, D2), dtype=jnp.float32)
    for mode in ["PN", "PN-SI", "PN-SCS"]:
        for rt in (None, 64):  # auto tile (single inner step) + multi-step accum
            out = pairnorm(x2, mode=mode, scale=10.0,
                           single_block_bytes=0, row_tile=rt)
            jax.block_until_ready(out)
            ref = _pairnorm_ref(x2, mode=mode, scale=10.0)
            if out.shape != x2.shape or not jnp.allclose(out, ref,
                                                         atol=1e-3, rtol=1e-3):
                raise AssertionError(f"tiled mismatch mode={mode} row_tile={rt}")

    print("KERNEL_OK")
</pallas_src>

<mosaic_0001>
module attributes {stable_mosaic.version = 11 : i64} {
  func.func @_pairnorm_single_block_kernel(%arg0: i32, %arg1: memref<64x32xf32, #tpu.memory_space<vmem>>, %arg2: memref<64x32xf32, #tpu.memory_space<vmem>>) attributes {dimension_semantics = [#tpu.dimension_semantics<arbitrary>], iteration_bounds = array<i64: 1>, scalar_prefetch = 0 : i64, scratch_operands = 0 : i64, tpu.core_type = #tpu.core_type<tc>, window_params = [{pipeline_mode = #tpu.pipeline_mode<synchronous>, transform_indices = @transform_0, window_bounds = array<i64: 64, 32>}, {pipeline_mode = #tpu.pipeline_mode<synchronous>, transform_indices = @transform_1, window_bounds = array<i64: 64, 32>}]} {
    %c0 = arith.constant 0 : index
    %c0_0 = arith.constant 0 : index
    %0 = vector.load %arg1[%c0, %c0_0] : memref<64x32xf32, #tpu.memory_space<vmem>>, vector<64x32xf32>
    %cst = arith.constant dense<0.000000e+00> : vector<32xf32>
    %1 = vector.multi_reduction <add>, %0, %cst [0] : vector<64x32xf32> to vector<32xf32>
    %2 = vector.shape_cast %1 : vector<32xf32> to vector<1x32xf32>
    %cst_1 = arith.constant 1.562500e-02 : f32
    %3 = vector.broadcast %cst_1 : f32 to vector<1x32xf32>
    %4 = arith.mulf %2, %3 : vector<1x32xf32>
    %5 = vector.broadcast %4 : vector<1x32xf32> to vector<64x32xf32>
    %6 = arith.subf %0, %5 : vector<64x32xf32>
    %7 = arith.mulf %6, %6 : vector<64x32xf32>
    %cst_2 = arith.constant dense<0.000000e+00> : vector<64xf32>
    %8 = vector.multi_reduction <add>, %7, %cst_2 [1] : vector<64x32xf32> to vector<64xf32>
    %9 = vector.shape_cast %8 : vector<64xf32> to vector<64x1xf32>
    %cst_3 = arith.constant dense<0.000000e+00> : vector<1xf32>
    %10 = vector.multi_reduction <add>, %9, %cst_3 [0] : vector<64x1xf32> to vector<1xf32>
    %11 = vector.shape_cast %10 : vector<1xf32> to vector<1x1xf32>
    %cst_4 = arith.constant 1.562500e-02 : f32
    %12 = vector.broadcast %cst_4 : f32 to vector<1x1xf32>
    %13 = arith.mulf %11, %12 : vector<1x1xf32>
    %cst_5 = arith.constant 9.99999997E-7 : f32
    %14 = vector.broadcast %cst_5 : f32 to vector<1x1xf32>
    %15 = arith.addf %14, %13 : vector<1x1xf32>
    %16 = math.rsqrt %15 : vector<1x1xf32>
    %cst_6 = arith.constant 1.000000e+01 : f32
    %17 = vector.broadcast %cst_6 : f32 to vector<1x1xf32>
    %18 = arith.mulf %17, %16 : vector<1x1xf32>
    %19 = vector.broadcast %18 : vector<1x1xf32> to vector<64x32xf32>
    %20 = arith.mulf %6, %19 : vector<64x32xf32>
    %c0_7 = arith.constant 0 : index
    %c0_8 = arith.constant 0 : index
    %21 = vector.load %arg2[%c0_7, %c0_8] : memref<64x32xf32, #tpu.memory_space<vmem>>, vector<64x32xf32>
    tpu.vector_store %arg2[%c0_7, %c0_8], %20 {strides = array<i32>} : memref<64x32xf32, #tpu.memory_space<vmem>>, vector<64x32xf32>,
    return
  }
  func.func @transform_0(%arg0: i32) -> (i32, i32) {
    %c0_i32 = arith.constant 0 : i32
    %c0_i32_0 = arith.constant 0 : i32
    %c0_i32_1 = arith.constant 0 : i32
    return %c0_i32, %c0_i32_0 : i32, i32
  }
  func.func @transform_1(%arg0: i32) -> (i32, i32) {
    %c0_i32 = arith.constant 0 : i32
    %c0_i32_0 = arith.constant 0 : i32
    %c0_i32_1 = arith.constant 0 : i32
    return %c0_i32, %c0_i32_0 : i32, i32
  }
}

</mosaic_0001>

<llo_original>
// kernel: tpu_custom_call.1
$region0: #{tpu_custom_call.1}
  #allocation0 [shape = 'u32[]', space=smem, size = 0x4, offset = 0x4, fixed_abs, tag = 'smem constant byte address 0x4 - core index']
  #allocation1 [shape = 'u32[72,128]{1,0:T(1,128)}', space=vmem, size = 0x9000, scoped, tag = 'internal scratch']
  %s0 = inlined_call_operand.vmem [shape: f32[64,32], index: 0, kind: input, shape index: {}]
  %s1 = inlined_call_operand.vmem [shape: f32[64,32], index: 1, kind: output, shape index: {}]
  %s2 = sld [smem:[#allocation0]]
  $region14: #{tpu_custom_call.1} parent=0
    _
  %s4 = ssub.s32 1, %s2
  %s5 = scalar_select 0, %s4, %s2
  // Predicated region
  $region2: #{tpu_custom_call.1} parent=0 // pred_check
    _
  $region3: #{tpu_custom_call.1} parent=0 // pred_check_branch
    %7 = sbr.rel (0) target = $region5
  $region4: #{tpu_custom_call.1} parent=0 // pred_region
    _
  $region5: #{tpu_custom_call.1} parent=0 // pred_fallthru
    _
  %v8 = vld [vmem:[%s0] sm:$0xff]
  %v9 = vld [vmem:[%s0 + $0x8] sm:$0xff]
  %v10 = vld [vmem:[%s0 + $0x10] sm:$0xff]
  %v11 = vld [vmem:[%s0 + $0x18] sm:$0xff]
  %v12 = vld [vmem:[%s0 + $0x20] sm:$0xff]
  %v13 = vld [vmem:[%s0 + $0x28] sm:$0xff]
  %v14 = vld [vmem:[%s0 + $0x30] sm:$0xff]
  %v15 = vld [vmem:[%s0 + $0x38] sm:$0xff]
  %vm16 = vcmask 261120
  %v17 = vsel %vm16, %v8, 0.0
  %v18 = vsel %vm16, %v9, 0.0
  %v19 = vadd.f32 %v17, %v18
  %v20 = vsel %vm16, %v10, 0.0
  %v21 = vadd.f32 %v19, %v20
  %v22 = vsel %vm16, %v11, 0.0
  %v23 = vadd.f32 %v21, %v22
  %v24 = vsel %vm16, %v12, 0.0
  %v25 = vadd.f32 %v23, %v24
  %v26 = vsel %vm16, %v13, 0.0
  %v27 = vadd.f32 %v25, %v26
  %v28 = vsel %vm16, %v14, 0.0
  %v29 = vadd.f32 %v27, %v28
  %v30 = vsel %vm16, %v15, 0.0
  %v31 = vadd.f32 %v29, %v30
  %v32 = vrot.slane %v31, 4
  %v33 = vadd.f32 %v31, %v32
  %v34 = vrot.slane %v33, 2
  %v35 = vadd.f32 %v33, %v34
  %v36 = vrot.slane %v35, 1
  %v37 = vadd.f32 %v35, %v36
  %v38 = vmul.f32 %v37, 0.015625
  %v39 = vsub.f32 %v8, %v38
  %v40 = vsub.f32 %v9, %v38
  %v41 = vsub.f32 %v10, %v38
  %v42 = vsub.f32 %v11, %v38
  %v43 = vsub.f32 %v12, %v38
  %v44 = vsub.f32 %v13, %v38
  %v45 = vsub.f32 %v14, %v38
  %v46 = vsub.f32 %v15, %v38
  %v47 = vmul.f32 %v39, %v39
  %v48 = vmul.f32 %v40, %v40
  %v49 = vmul.f32 %v41, %v41
  %v50 = vmul.f32 %v42, %v42
  %v51 = vmul.f32 %v43, %v43
  %v52 = vmul.f32 %v44, %v44
  %v53 = vmul.f32 %v45, %v45
  %v54 = vmul.f32 %v46, %v46
  %v55 = vsel %vm16, %v47, 0.0
  %56 = vadd.xlane.f32.xlu0 %v55
  %v57 = vpop.xlane.xlu0 %56
  %v58 = vsel %vm16, %v48, 0.0
  %59 = vadd.xlane.f32.xlu0 %v58
  %v60 = vpop.xlane.xlu0 %59
  %v61 = vsel %vm16, %v49, 0.0
  %62 = vadd.xlane.f32.xlu0 %v61
  %v63 = vpop.xlane.xlu0 %62
  %v64 = vsel %vm16, %v50, 0.0
  %65 = vadd.xlane.f32.xlu0 %v64
  %v66 = vpop.xlane.xlu0 %65
  %v67 = vsel %vm16, %v51, 0.0
  %68 = vadd.xlane.f32.xlu0 %v67
  %v69 = vpop.xlane.xlu0 %68
  %v70 = vsel %vm16, %v52, 0.0
  %71 = vadd.xlane.f32.xlu0 %v70
  %v72 = vpop.xlane.xlu0 %71
  %v73 = vsel %vm16, %v53, 0.0
  %74 = vadd.xlane.f32.xlu0 %v73
  %v75 = vpop.xlane.xlu0 %74
  %v76 = vsel %vm16, %v54, 0.0
  %77 = vadd.xlane.f32.xlu0 %v76
  %v78 = vpop.xlane.xlu0 %77
  %v79 = vadd.f32 %v57, %v60
  %v80 = vadd.f32 %v79, %v63
  %v81 = vadd.f32 %v80, %v66
  %v82 = vadd.f32 %v81, %v69
  %v83 = vadd.f32 %v82, %v72
  %v84 = vadd.f32 %v83, %v75
  %v85 = vadd.f32 %v84, %v78
  %v86 = vrot.slane %v85, 4
  %v87 = vadd.f32 %v85, %v86
  %v88 = vrot.slane %v87, 2
  %v89 = vadd.f32 %v87, %v88
  %v90 = vrot.slane %v89, 1
  %v91 = vadd.f32 %v89, %v90
  %v92 = vmul.f32 %v91, 0.015625
  %v93 = vadd.f32 %v92, 1e-06
  %v94 = vrsqrt.pop %v93
  %v95 = vmul.f32 %v94, %v93
  %v96 = vmul.f32 %v95, %v94
  %v97 = vmul.f32 0.5, %v96
  %v98 = vsub.f32 1.5, %v97
  %v99 = vmul.f32 %v94, %v98
  %vm100 = vweird.f32 %v93
  %vm101 = vweird.f32 %v94
  %vm102 = vmor %vm100, %vm101
  %v103 = vsel %vm102, %v94, %v99
  %v104 = vmul.f32 %v103, 10.0
  %v105 = vmul.f32 %v39, %v104
  %v106 = vmul.f32 %v40, %v104
  %v107 = vmul.f32 %v41, %v104
  %v108 = vmul.f32 %v42, %v104
  %v109 = vmul.f32 %v43, %v104
  %v110 = vmul.f32 %v44, %v104
  %v111 = vmul.f32 %v45, %v104
  %v112 = vmul.f32 %v46, %v104
  %113 = vst.msk [vmem:[%s1] sm:$0xff] %vm16, %v105
  %114 = vst.msk [vmem:[%s1 + $0x8] sm:$0xff] %vm16, %v106
  %115 = vst.msk [vmem:[%s1 + $0x10] sm:$0xff] %vm16, %v107
  %116 = vst.msk [vmem:[%s1 + $0x18] sm:$0xff] %vm16, %v108
  %117 = vst.msk [vmem:[%s1 + $0x20] sm:$0xff] %vm16, %v109
  %118 = vst.msk [vmem:[%s1 + $0x28] sm:$0xff] %vm16, %v110
  %119 = vst.msk [vmem:[%s1 + $0x30] sm:$0xff] %vm16, %v111
  %120 = vst.msk [vmem:[%s1 + $0x38] sm:$0xff] %vm16, %v112
  // Predicated region
  $region6: #{tpu_custom_call.1} parent=0 // pred_check
    _
  $region7: #{tpu_custom_call.1} parent=0 // pred_check_branch
    %122 = sbr.rel (0) target = $region9
  $region8: #{tpu_custom_call.1} parent=0 // pred_region
    _
  $region9: #{tpu_custom_call.1} parent=0 // pred_fallthru
    _
  // Predicated region
  $region10: #{tpu_custom_call.1} parent=0 // pred_check
    _
  $region11: #{tpu_custom_call.1} parent=0 // pred_check_branch
    %124 = sbr.rel (0) target = $region13
  $region12: #{tpu_custom_call.1} parent=0 // pred_region
    _
  $region13: #{tpu_custom_call.1} parent=0 // pred_fallthru
    _

</llo_original>
